<compile_context>
chip_gen: v7x
topology: tpu7x:2x2x1
jax: 0.10.0
libtpu: 0.0.40
codegen_flags: <defaults>
</compile_context>

<pallas_src>
import functools
import math

import jax
import jax.numpy as jnp
from jax.experimental import pallas as pl
from jax.experimental.pallas import tpu as pltpu


def _round_up(x, m):
    return ((x + m - 1) // m) * m


def _largest_divisor(n, candidates):
    for c in candidates:
        if n % c == 0:
            return c
    return None


def _vmem_budget_bytes():
    # Per-generation VMEM budget with ~20% headroom for compiler scratch / pipeline buffers.
    try:
        cap = int(pltpu.get_tpu_info().vmem_capacity_bytes)
    except Exception:
        cap = 64 << 20  # conservative (v7x-sized) fallback
    return int(cap * 0.8)


def _gelu_f32(g, approximate):
    if approximate:
        # tanh approximation -> EUP slot (relieves VALU, useful on v5e); not torch default.
        c = jnp.float32(math.sqrt(2.0 / math.pi))
        return 0.5 * g * (1.0 + jnp.tanh(c * (g + jnp.float32(0.044715) * g * g * g)))
    return 0.5 * g * (1.0 + jax.lax.erf(g * jnp.float32(1.0 / math.sqrt(2.0))))


# ------------------------- resident-weight kernels (grid over rows only) ---------------------


def _geglu_resident_kernel(x_ref, wv_ref, wg_ref, bv_ref, bg_ref, o_ref, *, approximate):
    # x_ref: (tm, K); wv/wg: (K, N) halves of the fused weight (resident, single-buffered);
    # bv/bg: (1, N); o_ref: (tm, N). No (tm, 2N) intermediate is ever materialized.
    x = x_ref[...].astype(wv_ref.dtype)  # in-kernel cast (bf16 path); no-op for f32
    h = jnp.dot(x, wv_ref[...], preferred_element_type=jnp.float32) + bv_ref[...]
    g = jnp.dot(x, wg_ref[...], preferred_element_type=jnp.float32) + bg_ref[...]
    o_ref[...] = (h * _gelu_f32(g, approximate)).astype(o_ref.dtype)


def _geglu_resident_fused_kernel(x_ref, w_ref, b_ref, o_ref, *, dim_out, approximate):
    # Fallback when dim_out % 128 != 0 (half-width BlockSpecs would be illegal).
    # Slice the *weight* columns (never the activations) -> no (tm, 2N) intermediate.
    x = x_ref[...].astype(w_ref.dtype)
    h = jnp.dot(x, w_ref[:, :dim_out], preferred_element_type=jnp.float32) + b_ref[0, :dim_out]
    g = jnp.dot(x, w_ref[:, dim_out:], preferred_element_type=jnp.float32) + b_ref[0, dim_out:]
    o_ref[...] = (h * _gelu_f32(g, approximate)).astype(o_ref.dtype)


# ------------------------- K/N-tiled kernel (v7x-sized weights) ------------------------------


def _geglu_tiled_kernel(x_ref, wv_ref, wg_ref, bv_ref, bg_ref, o_ref, acc_h, acc_g, *,
                        approximate):
    k = pl.program_id(2)

    @pl.when(k == 0)
    def _():
        acc_h[...] = jnp.zeros_like(acc_h)
        acc_g[...] = jnp.zeros_like(acc_g)

    x = x_ref[...].astype(wv_ref.dtype)
    acc_h[...] += jnp.dot(x, wv_ref[...], preferred_element_type=jnp.float32)
    acc_g[...] += jnp.dot(x, wg_ref[...], preferred_element_type=jnp.float32)

    @pl.when(k == pl.num_programs(2) - 1)
    def _():
        h = acc_h[...] + bv_ref[...]
        g = acc_g[...] + bg_ref[...]
        o_ref[...] = (h * _gelu_f32(g, approximate)).astype(o_ref.dtype)


# ------------------------------------- wrapper -----------------------------------------------


@functools.partial(jax.jit, static_argnames=("tm", "approximate", "force_tiled"))
def geglu(x, w_fused, b_fused, *, tm=256, approximate=False, force_tiled=False):
    """GEGLU forward.

    x:        (..., dim_in)               (f32; cast to W's dtype inside the kernel)
    w_fused:  (dim_in, 2*dim_out)         == torch weight.T (value columns first, gate second);
                                          pre-cast to bf16 once at init for the fast path.
    b_fused:  (1, 2*dim_out)              (kept f32; added onto the f32 accumulator)
    returns:  (..., dim_out)
    """
    orig_shape = x.shape
    dim_in = orig_shape[-1]
    two_n = w_fused.shape[-1]
    dim_out = two_n // 2
    assert w_fused.shape == (dim_in, two_n)
    assert b_fused.shape == (1, two_n)

    x2 = x.reshape(-1, dim_in)
    M = x2.shape[0]
    out_dtype = x.dtype

    x_isz = jnp.dtype(x2.dtype).itemsize
    w_isz = jnp.dtype(w_fused.dtype).itemsize
    o_isz = jnp.dtype(out_dtype).itemsize

    # Row tile: shrink (sublane-aligned) for tiny M; ragged last tile handled by Pallas.
    tm_eff = int(min(tm, _round_up(M, 8)))
    grid_m = pl.cdiv(M, tm_eff)

    budget = _vmem_budget_bytes()
    split_ok = (dim_out % 128 == 0)

    cost = pl.CostEstimate(
        flops=2 * M * dim_in * two_n,
        transcendentals=M * dim_out,
        bytes_accessed=(M * dim_in * x_isz + dim_in * two_n * w_isz + two_n * 4
                        + M * dim_out * o_isz),
    )

    # Resident-path VMEM need: single-buffered weight+bias, double-buffered x/out tiles,
    # ~(tm, 2N) of f32 epilogue temporaries, plus headroom.
    resident_need = (dim_in * two_n * w_isz + two_n * 4
                     + 2 * tm_eff * dim_in * x_isz
                     + 2 * tm_eff * dim_out * o_isz
                     + tm_eff * two_n * 4
                     + (2 << 20))

    use_tiled = bool(force_tiled) or (resident_need > budget)

    if use_tiled and split_ok:
        # ---- K/N-tiled path: weight never fully resident (v7x / large FFN). ----
        tn = _largest_divisor(dim_out, (512, 256, 128))
        tk = _largest_divisor(dim_in, (512, 256, 128)) or dim_in  # tk==K -> no K-reduction grid
        nk = dim_in // tk
        gate_off = dim_out // tn  # block offset of the gate half along the 2N axis

        kernel = functools.partial(_geglu_tiled_kernel, approximate=approximate)
        grid = (grid_m, dim_out // tn, nk)
        in_specs = [
            pl.BlockSpec((tm_eff, tk), lambda i, j, k: (i, k)),
            pl.BlockSpec((tk, tn), lambda i, j, k: (k, j)),
            pl.BlockSpec((tk, tn), lambda i, j, k: (k, j + gate_off)),
            pl.BlockSpec((1, tn), lambda i, j, k: (0, j)),
            pl.BlockSpec((1, tn), lambda i, j, k: (0, j + gate_off)),
        ]
        out_specs = pl.BlockSpec((tm_eff, tn), lambda i, j, k: (i, j))
        scratch = [pltpu.VMEM((tm_eff, tn), jnp.float32),
                   pltpu.VMEM((tm_eff, tn), jnp.float32)]
        semantics = ("parallel", "parallel", "arbitrary")
        operands = (x2, w_fused, w_fused, b_fused, b_fused)
        need = (2 * tm_eff * tk * x_isz + 4 * tk * tn * w_isz + 4 * tn * 4
                + 2 * tm_eff * tn * o_isz + 2 * tm_eff * tn * 4 + (2 << 20))
    else:
        # ---- resident-weight path (weight lives in VMEM for the whole call). ----
        # TODO(synk): if use_tiled was requested but dim_out % 128 != 0, a column-padded
        # weight layout is needed for the tiled path; we fall back to resident here.
        grid = (grid_m,)
        if split_ok:
            kernel = functools.partial(_geglu_resident_kernel, approximate=approximate)
            in_specs = [
                pl.BlockSpec((tm_eff, dim_in), lambda i: (i, 0)),
                pl.BlockSpec((dim_in, dim_out), lambda i: (0, 0),
                             pipeline_mode=pl.Buffered(1)),
                pl.BlockSpec((dim_in, dim_out), lambda i: (0, 1),
                             pipeline_mode=pl.Buffered(1)),
                pl.BlockSpec((1, dim_out), lambda i: (0, 0), pipeline_mode=pl.Buffered(1)),
                pl.BlockSpec((1, dim_out), lambda i: (0, 1), pipeline_mode=pl.Buffered(1)),
            ]
            operands = (x2, w_fused, w_fused, b_fused, b_fused)
        else:
            kernel = functools.partial(_geglu_resident_fused_kernel, dim_out=dim_out,
                                       approximate=approximate)
            in_specs = [
                pl.BlockSpec((tm_eff, dim_in), lambda i: (i, 0)),
                pl.BlockSpec((dim_in, two_n), lambda i: (0, 0), pipeline_mode=pl.Buffered(1)),
                pl.BlockSpec((1, two_n), lambda i: (0, 0), pipeline_mode=pl.Buffered(1)),
            ]
            operands = (x2, w_fused, b_fused)
        out_specs = pl.BlockSpec((tm_eff, dim_out), lambda i: (i, 0))
        scratch = []
        semantics = ("parallel",)
        need = resident_need

    vmem_limit = int(min(max(need, 32 << 20), budget))

    out = pl.pallas_call(
        kernel,
        out_shape=jax.ShapeDtypeStruct((M, dim_out), out_dtype),
        grid_spec=pltpu.PrefetchScalarGridSpec(
            num_scalar_prefetch=0,
            grid=grid,
            in_specs=in_specs,
            out_specs=out_specs,
            scratch_shapes=scratch,
        ),
        compiler_params=pltpu.CompilerParams(
            dimension_semantics=semantics,
            vmem_limit_bytes=vmem_limit,
        ),
        cost_estimate=cost,
    )(*operands)

    return out.reshape(*orig_shape[:-1], dim_out)


def geglu_reference(x, w_fused, b_fused):
    y = x @ w_fused + b_fused[0]
    h, g = jnp.split(y, 2, axis=-1)
    return h * jax.nn.gelu(g, approximate=False)


if __name__ == "__main__":
    key = jax.random.PRNGKey(0)
    batch, seq, dim_in, dim_out = 2, 8, 32, 128

    k_x, k_w, k_b, k_x2, k_w2 = jax.random.split(key, 5)
    x = jax.random.normal(k_x, (batch, seq, dim_in), dtype=jnp.float32)

    # nn.Linear(dim_in, dim_out * 2): weight (2*dim_out, dim_in), bias (2*dim_out,)
    bound = 1.0 / math.sqrt(dim_in)
    w_full = jax.random.uniform(k_w, (2 * dim_out, dim_in), jnp.float32, -bound, bound)
    b_full = jax.random.uniform(k_b, (2 * dim_out,), jnp.float32, -bound, bound)

    # torch: y = x @ W.T + b, chunk(2) -> value columns first, gate columns second.
    w_fused = w_full.T                 # (dim_in, 2*dim_out)
    b_fused = b_full[None, :]          # (1, 2*dim_out)

    # 1) default f32 resident path (exact torch GELU / f32 Linear parity)
    out = geglu(x, w_fused, b_fused)
    jax.block_until_ready(out)
    ref = geglu_reference(x, w_fused, b_fused)
    assert out.shape == (batch, seq, dim_out)
    assert jnp.allclose(out, ref, atol=1e-5, rtol=1e-5), "mismatch vs reference (f32)"

    # 2) ragged M: handled by pl.cdiv grid + masked last tile (no wrapper pad/slice)
    x_rag = jax.random.normal(k_x2, (3, 7, dim_in), dtype=jnp.float32)
    out_rag = geglu(x_rag, w_fused, b_fused)
    jax.block_until_ready(out_rag)
    assert out_rag.shape == (3, 7, dim_out)
    assert jnp.allclose(out_rag, geglu_reference(x_rag, w_fused, b_fused),
                        atol=1e-5, rtol=1e-5), "mismatch vs reference (ragged M)"

    # 3) bf16 weights (pre-cast once at init); x tile cast in-kernel, f32 accumulation
    out_bf16 = geglu(x, w_fused.astype(jnp.bfloat16), b_fused)
    jax.block_until_ready(out_bf16)
    assert jnp.allclose(out_bf16, ref, atol=5e-2, rtol=5e-2), "mismatch vs reference (bf16)"

    # 4) K/N-tiled path (used when the fused weight cannot stay VMEM-resident, e.g. v7x);
    #    force it at small shapes with a real K-reduction grid to validate accumulation.
    dim_in_t = 384
    x_t = jax.random.normal(k_x2, (batch, seq, dim_in_t), dtype=jnp.float32)
    bound_t = 1.0 / math.sqrt(dim_in_t)
    w_t = jax.random.uniform(k_w2, (dim_in_t, 2 * dim_out), jnp.float32, -bound_t, bound_t)
    out_t = geglu(x_t, w_t, b_fused, force_tiled=True)
    jax.block_until_ready(out_t)
    assert jnp.allclose(out_t, geglu_reference(x_t, w_t, b_fused),
                        atol=1e-4, rtol=1e-4), "mismatch vs reference (tiled)"

    print("KERNEL_OK")
</pallas_src>

<mosaic_0001>
module attributes {stable_mosaic.version = 11 : i64} {
  func.func @_geglu_resident_kernel(%arg0: i32, %arg1: memref<16x32xf32, #tpu.memory_space<vmem>>, %arg2: memref<32x128xf32, #tpu.memory_space<vmem>>, %arg3: memref<32x128xf32, #tpu.memory_space<vmem>>, %arg4: memref<1x128xf32, #tpu.memory_space<vmem>>, %arg5: memref<1x128xf32, #tpu.memory_space<vmem>>, %arg6: memref<16x128xf32, #tpu.memory_space<vmem>>) attributes {dimension_semantics = [#tpu.dimension_semantics<parallel>], iteration_bounds = array<i64: 1>, scalar_prefetch = 0 : i64, scratch_operands = 0 : i64, tpu.core_type = #tpu.core_type<tc>, window_params = [{transform_indices = @transform_0, window_bounds = array<i64: 16, 32>}, {pipeline_mode = #tpu.pipeline_mode<synchronous>, transform_indices = @transform_1, window_bounds = array<i64: 32, 128>}, {pipeline_mode = #tpu.pipeline_mode<synchronous>, transform_indices = @transform_2, window_bounds = array<i64: 32, 128>}, {pipeline_mode = #tpu.pipeline_mode<synchronous>, transform_indices = @transform_3, window_bounds = array<i64: 1, 128>}, {pipeline_mode = #tpu.pipeline_mode<synchronous>, transform_indices = @transform_4, window_bounds = array<i64: 1, 128>}, {transform_indices = @transform_5, window_bounds = array<i64: 16, 128>}]} {
    %c0 = arith.constant 0 : index
    %c0_0 = arith.constant 0 : index
    %0 = vector.load %arg1[%c0, %c0_0] : memref<16x32xf32, #tpu.memory_space<vmem>>, vector<16x32xf32>
    %c0_1 = arith.constant 0 : index
    %c0_2 = arith.constant 0 : index
    %1 = vector.load %arg2[%c0_1, %c0_2] : memref<32x128xf32, #tpu.memory_space<vmem>>, vector<32x128xf32>
    %cst = arith.constant dense<0.000000e+00> : vector<16x128xf32>
    %2 = tpu.matmul %0, %1, %cst {dimension_numbers = #tpu.dot_dimension_numbers<[1], [0], [0], [1], [0, 0, 1, 1], [], []>} : vector<16x32xf32>, vector<32x128xf32>, vector<16x128xf32> -> vector<16x128xf32>
    %c0_3 = arith.constant 0 : index
    %c0_4 = arith.constant 0 : index
    %3 = vector.load %arg4[%c0_3, %c0_4] : memref<1x128xf32, #tpu.memory_space<vmem>>, vector<1x128xf32>
    %4 = vector.broadcast %3 : vector<1x128xf32> to vector<16x128xf32>
    %5 = arith.addf %2, %4 : vector<16x128xf32>
    %c0_5 = arith.constant 0 : index
    %c0_6 = arith.constant 0 : index
    %6 = vector.load %arg3[%c0_5, %c0_6] : memref<32x128xf32, #tpu.memory_space<vmem>>, vector<32x128xf32>
    %cst_7 = arith.constant dense<0.000000e+00> : vector<16x128xf32>
    %7 = tpu.matmul %0, %6, %cst_7 {dimension_numbers = #tpu.dot_dimension_numbers<[1], [0], [0], [1], [0, 0, 1, 1], [], []>} : vector<16x32xf32>, vector<32x128xf32>, vector<16x128xf32> -> vector<16x128xf32>
    %c0_8 = arith.constant 0 : index
    %c0_9 = arith.constant 0 : index
    %8 = vector.load %arg5[%c0_8, %c0_9] : memref<1x128xf32, #tpu.memory_space<vmem>>, vector<1x128xf32>
    %9 = vector.broadcast %8 : vector<1x128xf32> to vector<16x128xf32>
    %10 = arith.addf %7, %9 : vector<16x128xf32>
    %cst_10 = arith.constant 5.000000e-01 : f32
    %11 = vector.broadcast %cst_10 : f32 to vector<16x128xf32>
    %12 = arith.mulf %11, %10 : vector<16x128xf32>
    %cst_11 = arith.constant 0.707106769 : f32
    %13 = vector.broadcast %cst_11 : f32 to vector<16x128xf32>
    %14 = arith.mulf %10, %13 : vector<16x128xf32>
    %15 = math.erf %14 : vector<16x128xf32>
    %cst_12 = arith.constant 1.000000e+00 : f32
    %16 = vector.broadcast %cst_12 : f32 to vector<16x128xf32>
    %17 = arith.addf %16, %15 : vector<16x128xf32>
    %18 = arith.mulf %12, %17 : vector<16x128xf32>
    %19 = arith.mulf %5, %18 : vector<16x128xf32>
    %c0_13 = arith.constant 0 : index
    %c0_14 = arith.constant 0 : index
    %20 = vector.load %arg6[%c0_13, %c0_14] : memref<16x128xf32, #tpu.memory_space<vmem>>, vector<16x128xf32>
    tpu.vector_store %arg6[%c0_13, %c0_14], %19 {strides = array<i32>} : memref<16x128xf32, #tpu.memory_space<vmem>>, vector<16x128xf32>,
    return
  }
  func.func @transform_0(%arg0: i32) -> (i32, i32) {
    %c0_i32 = arith.constant 0 : i32
    %c0_i32_0 = arith.constant 0 : i32
    return %arg0, %c0_i32 : i32, i32
  }
  func.func @transform_1(%arg0: i32) -> (i32, i32) {
    %c0_i32 = arith.constant 0 : i32
    %c0_i32_0 = arith.constant 0 : i32
    %c0_i32_1 = arith.constant 0 : i32
    return %c0_i32, %c0_i32_0 : i32, i32
  }
  func.func @transform_2(%arg0: i32) -> (i32, i32) {
    %c0_i32 = arith.constant 0 : i32
    %c1_i32 = arith.constant 1 : i32
    %c0_i32_0 = arith.constant 0 : i32
    return %c0_i32, %c1_i32 : i32, i32
  }
  func.func @transform_3(%arg0: i32) -> (i32, i32) {
    %c0_i32 = arith.constant 0 : i32
    %c0_i32_0 = arith.constant 0 : i32
    %c0_i32_1 = arith.constant 0 : i32
    return %c0_i32, %c0_i32_0 : i32, i32
  }
  func.func @transform_4(%arg0: i32) -> (i32, i32) {
    %c0_i32 = arith.constant 0 : i32
    %c1_i32 = arith.constant 1 : i32
    %c0_i32_0 = arith.constant 0 : i32
    return %c0_i32, %c1_i32 : i32, i32
  }
  func.func @transform_5(%arg0: i32) -> (i32, i32) {
    %c0_i32 = arith.constant 0 : i32
    %c0_i32_0 = arith.constant 0 : i32
    return %arg0, %c0_i32 : i32, i32
  }
}

</mosaic_0001>

<llo_original>
// kernel: geglu.1
$region0: #{geglu.1}
  #allocation0 [shape = 'u32[]', space=smem, size = 0x4, offset = 0x4, fixed_abs, tag = 'smem constant byte address 0x4 - core index']
  #allocation1 [shape = 'u32[144,128]{1,0:T(1,128)}', space=vmem, size = 0x12000, scoped, tag = 'internal scratch']
  %s0 = inlined_call_operand.hbm [shape: f32[16,32], index: 0, kind: input, shape index: {}]
  %s1 = inlined_call_operand.hbm [shape: f32[32,256], index: 1, kind: input, shape index: {}, may-alias: {1,2}]
  %s2 = inlined_call_operand.hbm [shape: f32[32,256], index: 2, kind: input, shape index: {}, may-alias: {1,2}]
  %s3 = inlined_call_operand.vmem [shape: f32[1,256], index: 3, kind: input, shape index: {}, may-alias: {3,4}]
  %s4 = inlined_call_operand.vmem [shape: f32[1,256], index: 4, kind: input, shape index: {}, may-alias: {3,4}]
  %s5 = inlined_call_operand.hbm [shape: f32[16,128], index: 5, kind: output, shape index: {}]
  %s6 = sld [smem:[#allocation0]]
  $region42: #{geglu.1} parent=0
    _
  %s8 = ssub.s32 1, %s6
  %s9 = scalar_select 0, %s8, %s6
  $region1: #{geglu.1} parent=0
    #allocation2 [shape = 'u8[8192]{0}', space=vmem, size = 0x2000, scoped, tag = 'input window, operand 0, single buffered']
    #allocation3 [shape = 's32[1]{0}', space=sflag, size = 0x4, scoped, tag = 'scoped memory for geglu.1']
    #allocation4 [shape = 's32[1]{0}', space=sflag, size = 0x4, scoped, tag = 'scoped memory for geglu.1']
    #allocation5 [shape = 'u8[16384]{0}', space=vmem, size = 0x4000, scoped, tag = 'input window, operand 1, single buffered']
    #allocation6 [shape = 's32[1]{0}', space=sflag, size = 0x4, scoped, tag = 'scoped memory for geglu.1']
    #allocation7 [shape = 'u8[16384]{0}', space=vmem, size = 0x4000, scoped, tag = 'input window, operand 2, single buffered']
    #allocation8 [shape = 'u8[8192]{0}', space=vmem, size = 0x2000, scoped, tag = 'output window, operand 0, single buffered']
    %10 = vsyncpa [#allocation3], 0
    %11 = vsyncpa [#allocation6], 0
    %12 = vsyncpa [#allocation4], 0
    // Predicated region
    $region2: #{geglu.1} parent=1 // pred_check
      _
    $region3: #{geglu.1} parent=1 // pred_check_branch
      %14 = sbr.rel (0) target = $region5
    $region4: #{geglu.1} parent=1 // pred_region
      %s16 = ssub.s32 256, 256
      %17 = vsyncadd [#allocation3], %s16
      %s18 = sshll.u32 [#allocation2], 4
      %s19 = int_to_ptr.vmem [resolvable:$true] %s18
      %24 = dma.hbm_to_vmem [thread:$0]  %s0, 256, %s19, [#allocation3], 128, 128, 8
    $region5: #{geglu.1} parent=1 // pred_fallthru
      _
    // Predicated region
    $region6: #{geglu.1} parent=1 // pred_check
      _
    $region7: #{geglu.1} parent=1 // pred_check_branch
      %26 = sbr.rel (0) target = $region9
    $region8: #{geglu.1} parent=1 // pred_region
      %s28 = ssub.s32 512, 512
      %29 = vsyncadd [#allocation6], %s28
      %s30 = sshll.u32 [#allocation5], 4
      %s31 = int_to_ptr.vmem [resolvable:$true] %s30
      %36 = dma.hbm_to_vmem [thread:$0]  %s1, 512, %s31, [#allocation6], 256, 128, 8
    $region9: #{geglu.1} parent=1 // pred_fallthru
      _
    // Predicated region
    $region10: #{geglu.1} parent=1 // pred_check
      _
    $region11: #{geglu.1} parent=1 // pred_check_branch
      %38 = sbr.rel (0) target = $region13
    $region12: #{geglu.1} parent=1 // pred_region
      %s40 = ssub.s32 512, 512
      %41 = vsyncadd [#allocation6], %s40
      %s42 = scalar_lea.hbm %s2, 128
      %s43 = sshll.u32 [#allocation7], 4
      %s44 = int_to_ptr.vmem [resolvable:$true] %s43
      %49 = dma.hbm_to_vmem [thread:$0]  %s42, 512, %s44, [#allocation6], 256, 128, 8
    $region13: #{geglu.1} parent=1 // pred_fallthru
      _
    // Predicated region
    $region14: #{geglu.1} parent=1 // pred_check
      _
    $region15: #{geglu.1} parent=1 // pred_check_branch
      %51 = sbr.rel (0) target = $region17
    $region16: #{geglu.1} parent=1 // pred_region
      _
    $region17: #{geglu.1} parent=1 // pred_fallthru
      _
    // Predicated region
    $region18: #{geglu.1} parent=1 // pred_check
      _
    $region19: #{geglu.1} parent=1 // pred_check_branch
      %53 = sbr.rel (0) target = $region21
    $region20: #{geglu.1} parent=1 // pred_region
      %s54 = scalar_lea.vmem %s4, 1
    $region21: #{geglu.1} parent=1 // pred_fallthru
      _
    // Predicated region
    $region22: #{geglu.1} parent=1 // pred_check
      _
    $region23: #{geglu.1} parent=1 // pred_check_branch
      %56 = sbr.rel (0) target = $region25
    $region24: #{geglu.1} parent=1 // pred_region
      %57 = dma.done [#allocation3], 256
    $region25: #{geglu.1} parent=1 // pred_fallthru
      _
    // Predicated region
    $region26: #{geglu.1} parent=1 // pred_check
      _
    $region27: #{geglu.1} parent=1 // pred_check_branch
      %59 = sbr.rel (0) target = $region29
    $region28: #{geglu.1} parent=1 // pred_region
      %60 = dma.done [#allocation6], 512
    $region29: #{geglu.1} parent=1 // pred_fallthru
      _
    // Predicated region
    $region30: #{geglu.1} parent=1 // pred_check
      _
    $region31: #{geglu.1} parent=1 // pred_check_branch
      %62 = sbr.rel (0) target = $region33
    $region32: #{geglu.1} parent=1 // pred_region
      %63 = dma.done [#allocation6], 512
    $region33: #{geglu.1} parent=1 // pred_fallthru
      _
    %s64 = scalar_lea.vmem %s4, 1
    %s65 = scalar_lea.vmem %s4, 1
    %v66 = vld [vmem:[#allocation2] sm:$0xff]
    %v67 = vld [vmem:[#allocation2 + $0x8] sm:$0xff]
    %v68 = vld [vmem:[#allocation5] sm:$0xff]
    %v69 = vld [vmem:[#allocation5 + $0x8] sm:$0xff]
    %v70 = vld [vmem:[#allocation5 + $0x10] sm:$0xff]
    %v71 = vld [vmem:[#allocation5 + $0x18] sm:$0xff]
    %v72 = vld [vmem:[%s3] sm:$0x1]
    %v74 = vlaneseq
    %v75 = vshrl.u32 %v74, 7
    %v76 = vsub.s32 0, %v75
    %v77 = vrot.slane %v72, %v76
    %vm79 = vcmask 261120
    %v81 = vsel %vm79, %v66, 0
    %v84 = vsel %vm79, %v67, 0
    %86 = vmatprep.subr.mxu0 0.0
    %87 = vmatpush1.msra.mxu0 %v68
    %88 = vmatprep.subr.mxu0 0.0
    %89 = vmatpush1.msra.mxu0 %v69
    %90 = vmatprep.subr.mxu0 0.0
    %91 = vmatpush1.msra.mxu0 %v70
    %92 = vmatprep.subr.mxu0 0.0
    %93 = vmatpush1.msra.mxu0 %v71
    %94 = vmatprep.subr.mxu0 0.0
    %95 = vmatpush1.msra.mxu0 0.0
    %96 = vmatprep.subr.mxu0 0.0
    %97 = vmatpush1.msra.mxu0 0.0
    %98 = vmatprep.subr.mxu0 0.0
    %99 = vmatpush1.msra.mxu0 0.0
    %100 = vmatprep.subr.mxu0 0.0
    %101 = vmatpush1.msra.mxu0 0.0
    %102 = vmatprep.subr.mxu0 0.0
    %103 = vmatpush1.msra.mxu0 0.0
    %104 = vmatprep.subr.mxu0 0.0
    %105 = vmatpush1.msra.mxu0 0.0
    %106 = vmatprep.subr.mxu0 0.0
    %107 = vmatpush1.msra.mxu0 0.0
    %108 = vmatprep.subr.mxu0 0.0
    %109 = vmatpush1.msra.mxu0 0.0
    %110 = vmatprep.subr.mxu0 0.0
    %111 = vmatpush1.msra.mxu0 0.0
    %112 = vmatprep.subr.mxu0 0.0
    %113 = vmatpush1.msra.mxu0 0.0
    %114 = vmatprep.subr.mxu0 0.0
    %115 = vmatpush1.msra.mxu0 0.0
    %116 = vmatprep.subr.mxu0 0.0
    %117 = vmatpush1.msra.mxu0 0.0
    %118 = vmatprep.subr.mxu0 0.0
    %119 = vmatpush1.msra.mxu0 0.0
    %120 = vmatprep.subr.mxu0 0.0
    %121 = vmatpush1.msra.mxu0 0.0
    %122 = vmatprep.subr.mxu0 0.0
    %123 = vmatpush1.msra.mxu0 0.0
    %124 = vmatprep.subr.mxu0 0.0
    %125 = vmatpush1.msra.mxu0 0.0
    %126 = vmatprep.subr.mxu0 0.0
    %127 = vmatpush1.msra.mxu0 0.0
    %128 = vmatprep.subr.mxu0 0.0
    %129 = vmatpush1.msra.mxu0 0.0
    %130 = vmatprep.subr.mxu0 0.0
    %131 = vmatpush1.msra.mxu0 0.0
    %132 = vmatprep.subr.mxu0 0.0
    %133 = vmatpush1.msra.mxu0 0.0
    %134 = vmatprep.subr.mxu0 0.0
    %135 = vmatpush1.msra.mxu0 0.0
    %136 = vmatprep.subr.mxu0 0.0
    %137 = vmatpush1.msra.mxu0 0.0
    %138 = vmatprep.subr.mxu0 0.0
    %139 = vmatpush1.msra.mxu0 0.0
    %140 = vmatprep.subr.mxu0 0.0
    %141 = vmatpush1.msra.mxu0 0.0
    %142 = vmatprep.subr.mxu0 0.0
    %143 = vmatpush1.msra.mxu0 0.0
    %144 = vmatprep.subr.mxu0 0.0
    %145 = vmatpush1.msra.mxu0 0.0
    %146 = vmatprep.subr.mxu0 0.0
    %147 = vmatpush1.msra.mxu0 0.0
    %148 = vmatprep.subr.mxu0 0.0
    %149 = vmatpush1.msra.mxu0 0.0
    %150 = vmatprep.mubr.f32.mxu0 0.0
    %151 = vmatmul.mubr.f32.gmra.mrb[0].mxu0 %v81
    %v152 = vpop.f32.mrb[0].mxu0
    %v153 = vadd.f32 %v77, %v152
    %v154 = vpop.f32.mrb[0].mxu0
    %155 = vmatprep.mubr.f32.mxu0 0.0
    %156 = vmatmul.mubr.f32.gmra.mrb[0].mxu0 %v84
    %v157 = vpop.f32.mrb[0].mxu0
    %v158 = vadd.f32 %v77, %v157
    %v159 = vpop.f32.mrb[0].mxu0
    %160 = vdwg.mxu0
    %v161 = vld [vmem:[#allocation7] sm:$0xff]
    %v162 = vld [vmem:[#allocation7 + $0x8] sm:$0xff]
    %v163 = vld [vmem:[#allocation7 + $0x10] sm:$0xff]
    %v164 = vld [vmem:[#allocation7 + $0x18] sm:$0xff]
    %v165 = vld [vmem:[%s65] sm:$0x1]
    %v167 = vlaneseq
    %v168 = vshrl.u32 %v167, 7
    %v169 = vsub.s32 0, %v168
    %v170 = vrot.slane %v165, %v169
    %172 = vmatprep.subr.mxu0 0.0
    %173 = vmatpush1.msra.mxu0 %v161
    %174 = vmatprep.subr.mxu0 0.0
    %175 = vmatpush1.msra.mxu0 %v162
    %176 = vmatprep.subr.mxu0 0.0
    %177 = vmatpush1.msra.mxu0 %v163
    %178 = vmatprep.subr.mxu0 0.0
    %179 = vmatpush1.msra.mxu0 %v164
    %180 = vmatprep.subr.mxu0 0.0
    %181 = vmatpush1.msra.mxu0 0.0
    %182 = vmatprep.subr.mxu0 0.0
    %183 = vmatpush1.msra.mxu0 0.0
    %184 = vmatprep.subr.mxu0 0.0
    %185 = vmatpush1.msra.mxu0 0.0
    %186 = vmatprep.subr.mxu0 0.0
    %187 = vmatpush1.msra.mxu0 0.0
    %188 = vmatprep.subr.mxu0 0.0
    %189 = vmatpush1.msra.mxu0 0.0
    %190 = vmatprep.subr.mxu0 0.0
    %191 = vmatpush1.msra.mxu0 0.0
    %192 = vmatprep.subr.mxu0 0.0
    %193 = vmatpush1.msra.mxu0 0.0
    %194 = vmatprep.subr.mxu0 0.0
    %195 = vmatpush1.msra.mxu0 0.0
    %196 = vmatprep.subr.mxu0 0.0
    %197 = vmatpush1.msra.mxu0 0.0
    %198 = vmatprep.subr.mxu0 0.0
    %199 = vmatpush1.msra.mxu0 0.0
    %200 = vmatprep.subr.mxu0 0.0
    %201 = vmatpush1.msra.mxu0 0.0
    %202 = vmatprep.subr.mxu0 0.0
    %203 = vmatpush1.msra.mxu0 0.0
    %204 = vmatprep.subr.mxu0 0.0
    %205 = vmatpush1.msra.mxu0 0.0
    %206 = vmatprep.subr.mxu0 0.0
    %207 = vmatpush1.msra.mxu0 0.0
    %208 = vmatprep.subr.mxu0 0.0
    %209 = vmatpush1.msra.mxu0 0.0
    %210 = vmatprep.subr.mxu0 0.0
    %211 = vmatpush1.msra.mxu0 0.0
    %212 = vmatprep.subr.mxu0 0.0
    %213 = vmatpush1.msra.mxu0 0.0
    %214 = vmatprep.subr.mxu0 0.0
    %215 = vmatpush1.msra.mxu0 0.0
    %216 = vmatprep.subr.mxu0 0.0
    %217 = vmatpush1.msra.mxu0 0.0
    %218 = vmatprep.subr.mxu0 0.0
    %219 = vmatpush1.msra.mxu0 0.0
    %220 = vmatprep.subr.mxu0 0.0
    %221 = vmatpush1.msra.mxu0 0.0
    %222 = vmatprep.subr.mxu0 0.0
    %223 = vmatpush1.msra.mxu0 0.0
    %224 = vmatprep.subr.mxu0 0.0
    %225 = vmatpush1.msra.mxu0 0.0
    %226 = vmatprep.subr.mxu0 0.0
    %227 = vmatpush1.msra.mxu0 0.0
    %228 = vmatprep.subr.mxu0 0.0
    %229 = vmatpush1.msra.mxu0 0.0
    %230 = vmatprep.subr.mxu0 0.0
    %231 = vmatpush1.msra.mxu0 0.0
    %232 = vmatprep.subr.mxu0 0.0
    %233 = vmatpush1.msra.mxu0 0.0
    %234 = vmatprep.subr.mxu0 0.0
    %235 = vmatpush1.msra.mxu0 0.0
    %236 = vmatprep.mubr.f32.mxu0 0.0
    %237 = vmatmul.mubr.f32.gmra.mrb[0].mxu0 %v81
    %v238 = vpop.f32.mrb[0].mxu0
    %v239 = vadd.f32 %v170, %v238
    %v240 = vpop.f32.mrb[0].mxu0
    %241 = vmatprep.mubr.f32.mxu0 0.0
    %242 = vmatmul.mubr.f32.gmra.mrb[0].mxu0 %v84
    %v243 = vpop.f32.mrb[0].mxu0
    %v244 = vadd.f32 %v170, %v243
    %v245 = vpop.f32.mrb[0].mxu0
    %246 = vdwg.mxu0
    %v247 = vmul.f32 %v239, 0.5
    %v248 = vmul.f32 %v244, 0.5
    %v249 = vmul.f32 %v239, 0.70710677
    %v250 = vmul.f32 %v244, 0.70710677
    %v251 = verf.f32.pop %v249
    %v252 = verf.f32.pop %v250
    %v253 = vadd.f32 %v251, 1.0
    %v254 = vadd.f32 %v252, 1.0
    %v255 = vmul.f32 %v247, %v253
    %v256 = vmul.f32 %v248, %v254
    %v257 = vmul.f32 %v153, %v255
    %v258 = vmul.f32 %v158, %v256
    %259 = vst [vmem:[#allocation8] sm:$0xff] %v257
    %260 = vst [vmem:[#allocation8 + $0x8] sm:$0xff] %v258
    // Predicated region
    $region34: #{geglu.1} parent=1 // pred_check
      _
    $region35: #{geglu.1} parent=1 // pred_check_branch
      %262 = sbr.rel (0) target = $region37
    $region36: #{geglu.1} parent=1 // pred_region
      %s264 = ssub.s32 256, 256
      %265 = vsyncadd [#allocation4], %s264
      %s266 = sshll.u32 [#allocation8], 4
      %s267 = int_to_ptr.vmem [resolvable:$true] %s266
      %272 = dma.vmem_to_hbm [thread:$0]  %s267, 256, %s5, [#allocation4], 128, 128, 8
    $region37: #{geglu.1} parent=1 // pred_fallthru
      _
    // Predicated region
    $region38: #{geglu.1} parent=1 // pred_check
      _
    $region39: #{geglu.1} parent=1 // pred_check_branch
      %274 = sbr.rel (0) target = $region41
    $region40: #{geglu.1} parent=1 // pred_region
      %275 = dma.done [#allocation4], 256
    $region41: #{geglu.1} parent=1 // pred_fallthru
      _
    %276 = vsyncpa [#allocation3], 1
    %277 = vsyncpa [#allocation6], 1
    %278 = vsyncpa [#allocation4], 1

</llo_original>
